<compile_context>
chip_gen: v5e
topology: v5e:2x2
jax: 0.10.0
libtpu: 0.0.40
codegen_flags: <defaults>
</compile_context>

<pallas_src>
import functools

import jax
import jax.numpy as jnp
from jax.experimental import pallas as pl
from jax.experimental.pallas import tpu as pltpu


_MASK_VALUE = -0.7 * float(jnp.finfo(jnp.float32).max)  # finite mask value
_NEG_INIT = -1e30                                       # finite running-max init


def _pick_tile(s, target):
    """Largest block size <= target that divides s and is a multiple of 8
    (or the full dimension, which is always a legal block)."""
    t = min(s, target)
    for cand in range(t, 0, -1):
        if s % cand == 0 and (cand % 8 == 0 or cand == s):
            return cand
    return s


def _flash_kernel(q_ref, kv_ref, o_ref, m_sc, l_sc, acc_sc, *,
                  scale, causal, num_heads, head_dim, seq_q, seq_k,
                  block_q, block_k):
    H, D = num_heads, head_dim
    HD = H * D
    qi = pl.program_id(1)
    ki = pl.program_id(2)

    @pl.when(ki == 0)
    def _init():
        m_sc[...] = jnp.full_like(m_sc, _NEG_INIT)
        l_sc[...] = jnp.zeros_like(l_sc)
        acc_sc[...] = jnp.zeros_like(acc_sc)

    def _step():
        q_all = q_ref[...]            # (block_q, H*D)   bf16
        kv_all = kv_ref[...]          # (block_k, 2*H*D) bf16
        if causal:
            off = seq_k - seq_q       # bottom-right aligned (flash-attn convention)
            row = qi * block_q + jax.lax.broadcasted_iota(
                jnp.int32, (block_q, block_k), 0)
            col = ki * block_k + jax.lax.broadcasted_iota(
                jnp.int32, (block_q, block_k), 1)
            visible = col <= row + off
        for h in range(H):
            qh = q_all[:, h * D:(h + 1) * D]                  # (bq, D) bf16
            kh = kv_all[:, h * D:(h + 1) * D]                 # (bk, D) bf16
            vh = kv_all[:, HD + h * D: HD + (h + 1) * D]      # (bk, D) bf16
            # bf16 x bf16 on the MXU, f32 accumulation.
            s = jax.lax.dot_general(
                qh, kh, (((1,), (1,)), ((), ())),
                preferred_element_type=jnp.float32) * scale   # (bq, bk) f32
            if causal:
                s = jnp.where(visible, s, _MASK_VALUE)
            m_prev = m_sc[h]                                  # (bq, 1) f32
            l_prev = l_sc[h]
            m_new = jnp.maximum(m_prev, jnp.max(s, axis=-1, keepdims=True))
            alpha = jnp.exp(m_prev - m_new)
            p = jnp.exp(s - m_new)                            # (bq, bk) f32
            l_sc[h] = alpha * l_prev + jnp.sum(p, axis=-1, keepdims=True)
            acc_sc[h] = alpha * acc_sc[h] + jnp.dot(
                p.astype(vh.dtype), vh, preferred_element_type=jnp.float32)
            m_sc[h] = m_new

    if causal:
        off = seq_k - seq_q
        # Skip kv tiles lying entirely above the diagonal for this q tile.
        not_fully_masked = (ki * block_k) <= (qi * block_q + block_q - 1 + off)
        pl.when(not_fully_masked)(_step)
    else:
        _step()

    @pl.when(ki == pl.num_programs(2) - 1)
    def _finalize():
        parts = []
        for h in range(H):
            l = l_sc[h]
            l = jnp.where(l == 0.0, 1.0, l)   # fully-masked rows -> output 0
            inv = pl.reciprocal(l, approx=True)
            parts.append(acc_sc[h] * inv)
        # single lane-dense (bq, H*D) f32 store
        o_ref[...] = jnp.concatenate(parts, axis=-1)


def attention_forward(q, kv, causal=False, softmax_scale=None,
                      *, block_q_target=256, block_k_target=512):
    """Pallas equivalent of Attention.forward with key_padding_mask=None."""
    # TODO(synk): key_padding_mask (unpad_input + varlen kv) path not implemented.
    # TODO(synk): attention dropout (training) not implemented (eval path only).
    B, Sq, H, D = q.shape
    Sk = kv.shape[1]
    assert kv.shape == (B, Sk, 2, H, D)

    scale = float(softmax_scale) if softmax_scale is not None else float(D) ** -0.5

    # TPU has no native f16 compute path: run bf16 (mirrors auto_fp16 casting).
    if q.dtype != jnp.bfloat16:
        q = q.astype(jnp.bfloat16)
    if kv.dtype != jnp.bfloat16:
        kv = kv.astype(jnp.bfloat16)

    HD = H * D
    # Free reshapes (no transpose / HBM copy): merge trailing contiguous dims.
    q2 = q.reshape(B, Sq, HD)
    kv2 = kv.reshape(B, Sk, 2 * HD)

    tq = _pick_tile(Sq, block_q_target)
    tk = _pick_tile(Sk, block_k_target)
    grid = (B, Sq // tq, Sk // tk)

    kernel = functools.partial(
        _flash_kernel, scale=scale, causal=causal, num_heads=H, head_dim=D,
        seq_q=Sq, seq_k=Sk, block_q=tq, block_k=tk)

    out = pl.pallas_call(
        kernel,
        out_shape=jax.ShapeDtypeStruct((B, Sq, HD), jnp.float32),
        grid_spec=pltpu.PrefetchScalarGridSpec(
            num_scalar_prefetch=0,
            grid=grid,
            in_specs=[
                # q : (B, Sq, H*D), contiguous (tq, H*D) tiles
                pl.BlockSpec((None, tq, HD), lambda b, qi, ki: (b, qi, 0)),
                # kv: (B, Sk, 2*H*D), contiguous (tk, 2*H*D) tiles (K and V together)
                pl.BlockSpec((None, tk, 2 * HD), lambda b, qi, ki: (b, ki, 0)),
            ],
            # output block index is independent of ki -> stays resident over the
            # kv reduction axis (accumulator pattern)
            out_specs=pl.BlockSpec((None, tq, HD), lambda b, qi, ki: (b, qi, 0)),
            scratch_shapes=[
                pltpu.VMEM((H, tq, 1), jnp.float32),   # running max  m
                pltpu.VMEM((H, tq, 1), jnp.float32),   # running sum  l
                pltpu.VMEM((H, tq, D), jnp.float32),   # accumulator
            ],
        ),
        compiler_params=pltpu.CompilerParams(
            dimension_semantics=("parallel", "parallel", "arbitrary"),
            vmem_limit_bytes=48 * 1024 * 1024,
        ),
    )(q2, kv2)

    # back to (B, Sq, H, D), fp32 (out_fp32=True in the PyTorch module) — free reshape
    return out.reshape(B, Sq, H, D)


def reference_attention(q, kv, causal=False, softmax_scale=None):
    B, Sq, H, D = q.shape
    Sk = kv.shape[1]
    scale = float(softmax_scale) if softmax_scale is not None else float(D) ** -0.5
    qf = q.astype(jnp.float32)
    kf = kv[:, :, 0].astype(jnp.float32)
    vf = kv[:, :, 1].astype(jnp.float32)
    s = jnp.einsum("bqhd,bkhd->bhqk", qf, kf) * scale
    if causal:
        qi = jnp.arange(Sq)[:, None]
        ki = jnp.arange(Sk)[None, :]
        s = jnp.where(ki <= qi + (Sk - Sq), s, -jnp.inf)
    p = jax.nn.softmax(s, axis=-1)
    return jnp.einsum("bhqk,bkhd->bqhd", p, vf)


if __name__ == "__main__":
    key = jax.random.PRNGKey(0)
    kq, kkv, kw, kq2, kkv2 = jax.random.split(key, 5)

    # --- small shapes consistent with the module: dim = H * D ---
    B, Sq, Sk, H, D = 2, 8, 8, 4, 16
    dim = H * D

    # Unused-by-forward parameters from __init__, initialized deterministically
    # for shape fidelity (q_proj / k_proj / v_proj weights and q/v biases).
    _w_q = jax.random.normal(kw, (dim, dim), jnp.float32) * 0.02
    _w_k = jax.random.normal(kw, (dim, dim), jnp.float32) * 0.02
    _w_v = jax.random.normal(kw, (dim, dim), jnp.float32) * 0.02
    _q_bias = jnp.zeros((dim,), jnp.float32)
    _v_bias = jnp.zeros((dim,), jnp.float32)

    q = jax.random.normal(kq, (B, Sq, H, D), jnp.float32).astype(jnp.bfloat16)
    kv = jax.random.normal(kkv, (B, Sk, 2, H, D), jnp.float32).astype(jnp.bfloat16)

    # 1) non-causal, single tile
    out = attention_forward(q, kv, causal=False, softmax_scale=None)
    out = jax.block_until_ready(out)
    ref = reference_attention(q, kv, causal=False, softmax_scale=None)
    assert out.shape == (B, Sq, H, D) and out.dtype == jnp.float32
    assert jnp.allclose(out, ref, atol=2e-2, rtol=2e-2), "mismatch (non-causal)"

    # 2) causal, multi-tile (exercises online-softmax accumulation + tile skipping)
    Sq2 = Sk2 = 32
    q2 = jax.random.normal(kq2, (B, Sq2, H, D), jnp.float32).astype(jnp.bfloat16)
    kv2 = jax.random.normal(kkv2, (B, Sk2, 2, H, D), jnp.float32).astype(jnp.bfloat16)
    out2 = attention_forward(q2, kv2, causal=True, softmax_scale=None,
                             block_q_target=16, block_k_target=8)
    out2 = jax.block_until_ready(out2)
    ref2 = reference_attention(q2, kv2, causal=True, softmax_scale=None)
    assert out2.shape == (B, Sq2, H, D) and out2.dtype == jnp.float32
    assert jnp.allclose(out2, ref2, atol=2e-2, rtol=2e-2), "mismatch (causal)"

    print("KERNEL_OK")
</pallas_src>

<mosaic_0001>
module attributes {stable_mosaic.version = 11 : i64} {
  func.func @_flash_kernel(%arg0: i32, %arg1: i32, %arg2: i32, %arg3: memref<1x8x64xbf16, #tpu.memory_space<vmem>>, %arg4: memref<1x8x128xbf16, #tpu.memory_space<vmem>>, %arg5: memref<1x8x64xf32, #tpu.memory_space<vmem>>, %arg6: memref<4x8x1xf32, #tpu.memory_space<vmem>>, %arg7: memref<4x8x1xf32, #tpu.memory_space<vmem>>, %arg8: memref<4x8x16xf32, #tpu.memory_space<vmem>>) attributes {dimension_semantics = [#tpu.dimension_semantics<parallel>, #tpu.dimension_semantics<parallel>, #tpu.dimension_semantics<arbitrary>], iteration_bounds = array<i64: 2, 1, 1>, scalar_prefetch = 0 : i64, scratch_operands = 3 : i64, tpu.core_type = #tpu.core_type<tc>, window_params = [{transform_indices = @transform_0, window_bounds = array<i64: 1, 8, 64>}, {transform_indices = @transform_1, window_bounds = array<i64: 1, 8, 128>}, {transform_indices = @transform_2, window_bounds = array<i64: 1, 8, 64>}]} {
    %c0_i32 = arith.constant 0 : i32
    %0 = arith.cmpi eq, %arg2, %c0_i32 : i32
    %1 = arith.extui %0 : i1 to i32
    %c0_i32_0 = arith.constant 0 : i32
    %2 = arith.cmpi ne, %1, %c0_i32_0 : i32
    scf.if %2 {
      %cst_96 = arith.constant -1.000000e+30 : f32
      %162 = vector.broadcast %cst_96 : f32 to vector<4x8x1xf32>
      %c0_97 = arith.constant 0 : index
      %c0_98 = arith.constant 0 : index
      %c0_99 = arith.constant 0 : index
      %163 = vector.load %arg6[%c0_97, %c0_98, %c0_99] : memref<4x8x1xf32, #tpu.memory_space<vmem>>, vector<4x8x1xf32>
      tpu.vector_store %arg6[%c0_97, %c0_98, %c0_99], %162 {strides = array<i32>} : memref<4x8x1xf32, #tpu.memory_space<vmem>>, vector<4x8x1xf32>,
      %cst_100 = arith.constant 0.000000e+00 : f32
      %164 = vector.broadcast %cst_100 : f32 to vector<4x8x1xf32>
      %c0_101 = arith.constant 0 : index
      %c0_102 = arith.constant 0 : index
      %c0_103 = arith.constant 0 : index
      %165 = vector.load %arg7[%c0_101, %c0_102, %c0_103] : memref<4x8x1xf32, #tpu.memory_space<vmem>>, vector<4x8x1xf32>
      tpu.vector_store %arg7[%c0_101, %c0_102, %c0_103], %164 {strides = array<i32>} : memref<4x8x1xf32, #tpu.memory_space<vmem>>, vector<4x8x1xf32>,
      %cst_104 = arith.constant 0.000000e+00 : f32
      %166 = vector.broadcast %cst_104 : f32 to vector<4x8x16xf32>
      %c0_105 = arith.constant 0 : index
      %c0_106 = arith.constant 0 : index
      %c0_107 = arith.constant 0 : index
      %167 = vector.load %arg8[%c0_105, %c0_106, %c0_107] : memref<4x8x16xf32, #tpu.memory_space<vmem>>, vector<4x8x16xf32>
      tpu.vector_store %arg8[%c0_105, %c0_106, %c0_107], %166 {strides = array<i32>} : memref<4x8x16xf32, #tpu.memory_space<vmem>>, vector<4x8x16xf32>,
    } else {
    }
    %c0 = arith.constant 0 : index
    %c0_1 = arith.constant 0 : index
    %c0_2 = arith.constant 0 : index
    %3 = vector.load %arg3[%c0, %c0_1, %c0_2] : memref<1x8x64xbf16, #tpu.memory_space<vmem>>, vector<1x8x64xbf16>
    %4 = vector.shape_cast %3 : vector<1x8x64xbf16> to vector<8x64xbf16>
    %c0_3 = arith.constant 0 : index
    %c0_4 = arith.constant 0 : index
    %c0_5 = arith.constant 0 : index
    %5 = vector.load %arg4[%c0_3, %c0_4, %c0_5] : memref<1x8x128xbf16, #tpu.memory_space<vmem>>, vector<1x8x128xbf16>
    %6 = vector.shape_cast %5 : vector<1x8x128xbf16> to vector<8x128xbf16>
    %7 = vector.extract_strided_slice %4 {offsets = [0, 0], sizes = [8, 16], strides = [1, 1]} : vector<8x64xbf16> to vector<8x16xbf16>
    %8 = vector.extract_strided_slice %6 {offsets = [0, 0], sizes = [8, 16], strides = [1, 1]} : vector<8x128xbf16> to vector<8x16xbf16>
    %9 = vector.extract_strided_slice %6 {offsets = [0, 64], sizes = [8, 16], strides = [1, 1]} : vector<8x128xbf16> to vector<8x16xbf16>
    %cst = arith.constant dense<0.000000e+00> : vector<8x8xf32>
    %10 = tpu.matmul %7, %8, %cst {dimension_numbers = #tpu.dot_dimension_numbers<[1], [1], [0], [0], [0, 0, 1, 0], [], []>} : vector<8x16xbf16>, vector<8x16xbf16>, vector<8x8xf32> -> vector<8x8xf32>
    %cst_6 = arith.constant 2.500000e-01 : f32
    %11 = vector.broadcast %cst_6 : f32 to vector<8x8xf32>
    %12 = arith.mulf %10, %11 : vector<8x8xf32>
    %c0_7 = arith.constant 0 : index
    %c0_8 = arith.constant 0 : index
    %c0_9 = arith.constant 0 : index
    %13 = vector.load %arg6[%c0_7, %c0_8, %c0_9] : memref<4x8x1xf32, #tpu.memory_space<vmem>>, vector<1x8x1xf32>
    %14 = vector.shape_cast %13 : vector<1x8x1xf32> to vector<8x1xf32>
    %c0_10 = arith.constant 0 : index
    %c0_11 = arith.constant 0 : index
    %c0_12 = arith.constant 0 : index
    %15 = vector.load %arg7[%c0_10, %c0_11, %c0_12] : memref<4x8x1xf32, #tpu.memory_space<vmem>>, vector<1x8x1xf32>
    %16 = vector.shape_cast %15 : vector<1x8x1xf32> to vector<8x1xf32>
    %cst_13 = arith.constant dense<0xFF800000> : vector<8xf32>
    %17 = vector.multi_reduction <maximumf>, %12, %cst_13 [1] : vector<8x8xf32> to vector<8xf32>
    %18 = vector.shape_cast %17 : vector<8xf32> to vector<8x1xf32>
    %19 = arith.maximumf %14, %18 : vector<8x1xf32>
    %20 = arith.subf %14, %19 : vector<8x1xf32>
    %21 = math.exp %20 : vector<8x1xf32>
    %22 = vector.broadcast %19 : vector<8x1xf32> to vector<8x8xf32>
    %23 = arith.subf %12, %22 : vector<8x8xf32>
    %24 = math.exp %23 : vector<8x8xf32>
    %25 = arith.mulf %21, %16 : vector<8x1xf32>
    %cst_14 = arith.constant dense<0.000000e+00> : vector<8xf32>
    %26 = vector.multi_reduction <add>, %24, %cst_14 [1] : vector<8x8xf32> to vector<8xf32>
    %27 = vector.shape_cast %26 : vector<8xf32> to vector<8x1xf32>
    %28 = arith.addf %25, %27 : vector<8x1xf32>
    %c0_15 = arith.constant 0 : index
    %c0_16 = arith.constant 0 : index
    %c0_17 = arith.constant 0 : index
    %29 = vector.load %arg7[%c0_15, %c0_16, %c0_17] : memref<4x8x1xf32, #tpu.memory_space<vmem>>, vector<1x8x1xf32>
    %30 = vector.shape_cast %29 : vector<1x8x1xf32> to vector<8x1xf32>
    %31 = vector.shape_cast %28 : vector<8x1xf32> to vector<1x8x1xf32>
    tpu.vector_store %arg7[%c0_15, %c0_16, %c0_17], %31 {strides = array<i32>} : memref<4x8x1xf32, #tpu.memory_space<vmem>>, vector<1x8x1xf32>,
    %c0_18 = arith.constant 0 : index
    %c0_19 = arith.constant 0 : index
    %c0_20 = arith.constant 0 : index
    %32 = vector.load %arg8[%c0_18, %c0_19, %c0_20] : memref<4x8x16xf32, #tpu.memory_space<vmem>>, vector<1x8x16xf32>
    %33 = vector.shape_cast %32 : vector<1x8x16xf32> to vector<8x16xf32>
    %34 = vector.broadcast %21 : vector<8x1xf32> to vector<8x16xf32>
    %35 = arith.mulf %34, %33 : vector<8x16xf32>
    %36 = arith.truncf %24 : vector<8x8xf32> to vector<8x8xbf16>
    %cst_21 = arith.constant dense<0.000000e+00> : vector<8x16xf32>
    %37 = tpu.matmul %36, %9, %cst_21 {dimension_numbers = #tpu.dot_dimension_numbers<[1], [0], [0], [1], [0, 0, 1, 1], [], []>} : vector<8x8xbf16>, vector<8x16xbf16>, vector<8x16xf32> -> vector<8x16xf32>
    %38 = arith.addf %35, %37 : vector<8x16xf32>
    %c0_22 = arith.constant 0 : index
    %c0_23 = arith.constant 0 : index
    %c0_24 = arith.constant 0 : index
    %39 = vector.load %arg8[%c0_22, %c0_23, %c0_24] : memref<4x8x16xf32, #tpu.memory_space<vmem>>, vector<1x8x16xf32>
    %40 = vector.shape_cast %39 : vector<1x8x16xf32> to vector<8x16xf32>
    %41 = vector.shape_cast %38 : vector<8x16xf32> to vector<1x8x16xf32>
    tpu.vector_store %arg8[%c0_22, %c0_23, %c0_24], %41 {strides = array<i32>} : memref<4x8x16xf32, #tpu.memory_space<vmem>>, vector<1x8x16xf32>,
    %c0_25 = arith.constant 0 : index
    %c0_26 = arith.constant 0 : index
    %c0_27 = arith.constant 0 : index
    %42 = vector.load %arg6[%c0_25, %c0_26, %c0_27] : memref<4x8x1xf32, #tpu.memory_space<vmem>>, vector<1x8x1xf32>
    %43 = vector.shape_cast %42 : vector<1x8x1xf32> to vector<8x1xf32>
    %44 = vector.shape_cast %19 : vector<8x1xf32> to vector<1x8x1xf32>
    tpu.vector_store %arg6[%c0_25, %c0_26, %c0_27], %44 {strides = array<i32>} : memref<4x8x1xf32, #tpu.memory_space<vmem>>, vector<1x8x1xf32>,
    %45 = vector.extract_strided_slice %4 {offsets = [0, 16], sizes = [8, 16], strides = [1, 1]} : vector<8x64xbf16> to vector<8x16xbf16>
    %46 = vector.extract_strided_slice %6 {offsets = [0, 16], sizes = [8, 16], strides = [1, 1]} : vector<8x128xbf16> to vector<8x16xbf16>
    %47 = vector.extract_strided_slice %6 {offsets = [0, 80], sizes = [8, 16], strides = [1, 1]} : vector<8x128xbf16> to vector<8x16xbf16>
    %cst_28 = arith.constant dense<0.000000e+00> : vector<8x8xf32>
    %48 = tpu.matmul %45, %46, %cst_28 {dimension_numbers = #tpu.dot_dimension_numbers<[1], [1], [0], [0], [0, 0, 1, 0], [], []>} : vector<8x16xbf16>, vector<8x16xbf16>, vector<8x8xf32> -> vector<8x8xf32>
    %cst_29 = arith.constant 2.500000e-01 : f32
    %49 = vector.broadcast %cst_29 : f32 to vector<8x8xf32>
    %50 = arith.mulf %48, %49 : vector<8x8xf32>
    %c1 = arith.constant 1 : index
    %c0_30 = arith.constant 0 : index
    %c0_31 = arith.constant 0 : index
    %51 = vector.load %arg6[%c1, %c0_30, %c0_31] : memref<4x8x1xf32, #tpu.memory_space<vmem>>, vector<1x8x1xf32>
    %52 = vector.shape_cast %51 : vector<1x8x1xf32> to vector<8x1xf32>
    %c1_32 = arith.constant 1 : index
    %c0_33 = arith.constant 0 : index
    %c0_34 = arith.constant 0 : index
    %53 = vector.load %arg7[%c1_32, %c0_33, %c0_34] : memref<4x8x1xf32, #tpu.memory_space<vmem>>, vector<1x8x1xf32>
    %54 = vector.shape_cast %53 : vector<1x8x1xf32> to vector<8x1xf32>
    %cst_35 = arith.constant dense<0xFF800000> : vector<8xf32>
    %55 = vector.multi_reduction <maximumf>, %50, %cst_35 [1] : vector<8x8xf32> to vector<8xf32>
    %56 = vector.shape_cast %55 : vector<8xf32> to vector<8x1xf32>
    %57 = arith.maximumf %52, %56 : vector<8x1xf32>
    %58 = arith.subf %52, %57 : vector<8x1xf32>
    %59 = math.exp %58 : vector<8x1xf32>
    %60 = vector.broadcast %57 : vector<8x1xf32> to vector<8x8xf32>
    %61 = arith.subf %50, %60 : vector<8x8xf32>
    %62 = math.exp %61 : vector<8x8xf32>
    %63 = arith.mulf %59, %54 : vector<8x1xf32>
    %cst_36 = arith.constant dense<0.000000e+00> : vector<8xf32>
    %64 = vector.multi_reduction <add>, %62, %cst_36 [1] : vector<8x8xf32> to vector<8xf32>
    %65 = vector.shape_cast %64 : vector<8xf32> to vector<8x1xf32>
    %66 = arith.addf %63, %65 : vector<8x1xf32>
    %c1_37 = arith.constant 1 : index
    %c0_38 = arith.constant 0 : index
    %c0_39 = arith.constant 0 : index
    %67 = vector.load %arg7[%c1_37, %c0_38, %c0_39] : memref<4x8x1xf32, #tpu.memory_space<vmem>>, vector<1x8x1xf32>
    %68 = vector.shape_cast %67 : vector<1x8x1xf32> to vector<8x1xf32>
    %69 = vector.shape_cast %66 : vector<8x1xf32> to vector<1x8x1xf32>
    tpu.vector_store %arg7[%c1_37, %c0_38, %c0_39], %69 {strides = array<i32>} : memref<4x8x1xf32, #tpu.memory_space<vmem>>, vector<1x8x1xf32>,
    %c1_40 = arith.constant 1 : index
    %c0_41 = arith.constant 0 : index
    %c0_42 = arith.constant 0 : index
    %70 = vector.load %arg8[%c1_40, %c0_41, %c0_42] : memref<4x8x16xf32, #tpu.memory_space<vmem>>, vector<1x8x16xf32>
    %71 = vector.shape_cast %70 : vector<1x8x16xf32> to vector<8x16xf32>
    %72 = vector.broadcast %59 : vector<8x1xf32> to vector<8x16xf32>
    %73 = arith.mulf %72, %71 : vector<8x16xf32>
    %74 = arith.truncf %62 : vector<8x8xf32> to vector<8x8xbf16>
    %cst_43 = arith.constant dense<0.000000e+00> : vector<8x16xf32>
    %75 = tpu.matmul %74, %47, %cst_43 {dimension_numbers = #tpu.dot_dimension_numbers<[1], [0], [0], [1], [0, 0, 1, 1], [], []>} : vector<8x8xbf16>, vector<8x16xbf16>, vector<8x16xf32> -> vector<8x16xf32>
    %76 = arith.addf %73, %75 : vector<8x16xf32>
    %c1_44 = arith.constant 1 : index
    %c0_45 = arith.constant 0 : index
    %c0_46 = arith.constant 0 : index
    %77 = vector.load %arg8[%c1_44, %c0_45, %c0_46] : memref<4x8x16xf32, #tpu.memory_space<vmem>>, vector<1x8x16xf32>
    %78 = vector.shape_cast %77 : vector<1x8x16xf32> to vector<8x16xf32>
    %79 = vector.shape_cast %76 : vector<8x16xf32> to vector<1x8x16xf32>
    tpu.vector_store %arg8[%c1_44, %c0_45, %c0_46], %79 {strides = array<i32>} : memref<4x8x16xf32, #tpu.memory_space<vmem>>, vector<1x8x16xf32>,
    %c1_47 = arith.constant 1 : index
    %c0_48 = arith.constant 0 : index
    %c0_49 = arith.constant 0 : index
    %80 = vector.load %arg6[%c1_47, %c0_48, %c0_49] : memref<4x8x1xf32, #tpu.memory_space<vmem>>, vector<1x8x1xf32>
    %81 = vector.shape_cast %80 : vector<1x8x1xf32> to vector<8x1xf32>
    %82 = vector.shape_cast %57 : vector<8x1xf32> to vector<1x8x1xf32>
    tpu.vector_store %arg6[%c1_47, %c0_48, %c0_49], %82 {strides = array<i32>} : memref<4x8x1xf32, #tpu.memory_space<vmem>>, vector<1x8x1xf32>,
    %83 = vector.extract_strided_slice %4 {offsets = [0, 32], sizes = [8, 16], strides = [1, 1]} : vector<8x64xbf16> to vector<8x16xbf16>
    %84 = vector.extract_strided_slice %6 {offsets = [0, 32], sizes = [8, 16], strides = [1, 1]} : vector<8x128xbf16> to vector<8x16xbf16>
    %85 = vector.extract_strided_slice %6 {offsets = [0, 96], sizes = [8, 16], strides = [1, 1]} : vector<8x128xbf16> to vector<8x16xbf16>
    %cst_50 = arith.constant dense<0.000000e+00> : vector<8x8xf32>
    %86 = tpu.matmul %83, %84, %cst_50 {dimension_numbers = #tpu.dot_dimension_numbers<[1], [1], [0], [0], [0, 0, 1, 0], [], []>} : vector<8x16xbf16>, vector<8x16xbf16>, vector<8x8xf32> -> vector<8x8xf32>
    %cst_51 = arith.constant 2.500000e-01 : f32
    %87 = vector.broadcast %cst_51 : f32 to vector<8x8xf32>
    %88 = arith.mulf %86, %87 : vector<8x8xf32>
    %c2 = arith.constant 2 : index
    %c0_52 = arith.constant 0 : index
    %c0_53 = arith.constant 0 : index
    %89 = vector.load %arg6[%c2, %c0_52, %c0_53] : memref<4x8x1xf32, #tpu.memory_space<vmem>>, vector<1x8x1xf32>
    %90 = vector.shape_cast %89 : vector<1x8x1xf32> to vector<8x1xf32>
    %c2_54 = arith.constant 2 : index
    %c0_55 = arith.constant 0 : index
    %c0_56 = arith.constant 0 : index
    %91 = vector.load %arg7[%c2_54, %c0_55, %c0_56] : memref<4x8x1xf32, #tpu.memory_space<vmem>>, vector<1x8x1xf32>
    %92 = vector.shape_cast %91 : vector<1x8x1xf32> to vector<8x1xf32>
    %cst_57 = arith.constant dense<0xFF800000> : vector<8xf32>
    %93 = vector.multi_reduction <maximumf>, %88, %cst_57 [1] : vector<8x8xf32> to vector<8xf32>
    %94 = vector.shape_cast %93 : vector<8xf32> to vector<8x1xf32>
    %95 = arith.maximumf %90, %94 : vector<8x1xf32>
    %96 = arith.subf %90, %95 : vector<8x1xf32>
    %97 = math.exp %96 : vector<8x1xf32>
    %98 = vector.broadcast %95 : vector<8x1xf32> to vector<8x8xf32>
    %99 = arith.subf %88, %98 : vector<8x8xf32>
    %100 = math.exp %99 : vector<8x8xf32>
    %101 = arith.mulf %97, %92 : vector<8x1xf32>
    %cst_58 = arith.constant dense<0.000000e+00> : vector<8xf32>
    %102 = vector.multi_reduction <add>, %100, %cst_58 [1] : vector<8x8xf32> to vector<8xf32>
    %103 = vector.shape_cast %102 : vector<8xf32> to vector<8x1xf32>
    %104 = arith.addf %101, %103 : vector<8x1xf32>
    %c2_59 = arith.constant 2 : index
    %c0_60 = arith.constant 0 : index
    %c0_61 = arith.constant 0 : index
    %105 = vector.load %arg7[%c2_59, %c0_60, %c0_61] : memref<4x8x1xf32, #tpu.memory_space<vmem>>, vector<1x8x1xf32>
    %106 = vector.shape_cast %105 : vector<1x8x1xf32> to vector<8x1xf32>
    %107 = vector.shape_cast %104 : vector<8x1xf32> to vector<1x8x1xf32>
    tpu.vector_store %arg7[%c2_59, %c0_60, %c0_61], %107 {strides = array<i32>} : memref<4x8x1xf32, #tpu.memory_space<vmem>>, vector<1x8x1xf32>,
    %c2_62 = arith.constant 2 : index
    %c0_63 = arith.constant 0 : index
    %c0_64 = arith.constant 0 : index
    %108 = vector.load %arg8[%c2_62, %c0_63, %c0_64] : memref<4x8x16xf32, #tpu.memory_space<vmem>>, vector<1x8x16xf32>
    %109 = vector.shape_cast %108 : vector<1x8x16xf32> to vector<8x16xf32>
    %110 = vector.broadcast %97 : vector<8x1xf32> to vector<8x16xf32>
    %111 = arith.mulf %110, %109 : vector<8x16xf32>
    %112 = arith.truncf %100 : vector<8x8xf32> to vector<8x8xbf16>
    %cst_65 = arith.constant dense<0.000000e+00> : vector<8x16xf32>
    %113 = tpu.matmul %112, %85, %cst_65 {dimension_numbers = #tpu.dot_dimension_numbers<[1], [0], [0], [1], [0, 0, 1, 1], [], []>} : vector<8x8xbf16>, vector<8x16xbf16>, vector<8x16xf32> -> vector<8x16xf32>
    %114 = arith.addf %111, %113 : vector<8x16xf32>
    %c2_66 = arith.constant 2 : index
    %c0_67 = arith.constant 0 : index
    %c0_68 = arith.constant 0 : index
    %115 = vector.load %arg8[%c2_66, %c0_67, %c0_68] : memref<4x8x16xf32, #tpu.memory_space<vmem>>, vector<1x8x16xf32>
    %116 = vector.shape_cast %115 : vector<1x8x16xf32> to vector<8x16xf32>
    %117 = vector.shape_cast %114 : vector<8x16xf32> to vector<1x8x16xf32>
    tpu.vector_store %arg8[%c2_66, %c0_67, %c0_68], %117 {strides = array<i32>} : memref<4x8x16xf32, #tpu.memory_space<vmem>>, vector<1x8x16xf32>,
    %c2_69 = arith.constant 2 : index
    %c0_70 = arith.constant 0 : index
    %c0_71 = arith.constant 0 : index
    %118 = vector.load %arg6[%c2_69, %c0_70, %c0_71] : memref<4x8x1xf32, #tpu.memory_space<vmem>>, vector<1x8x1xf32>
    %119 = vector.shape_cast %118 : vector<1x8x1xf32> to vector<8x1xf32>
    %120 = vector.shape_cast %95 : vector<8x1xf32> to vector<1x8x1xf32>
    tpu.vector_store %arg6[%c2_69, %c0_70, %c0_71], %120 {strides = array<i32>} : memref<4x8x1xf32, #tpu.memory_space<vmem>>, vector<1x8x1xf32>,
    %121 = vector.extract_strided_slice %4 {offsets = [0, 48], sizes = [8, 16], strides = [1, 1]} : vector<8x64xbf16> to vector<8x16xbf16>
    %122 = vector.extract_strided_slice %6 {offsets = [0, 48], sizes = [8, 16], strides = [1, 1]} : vector<8x128xbf16> to vector<8x16xbf16>
    %123 = vector.extract_strided_slice %6 {offsets = [0, 112], sizes = [8, 16], strides = [1, 1]} : vector<8x128xbf16> to vector<8x16xbf16>
    %cst_72 = arith.constant dense<0.000000e+00> : vector<8x8xf32>
    %124 = tpu.matmul %121, %122, %cst_72 {dimension_numbers = #tpu.dot_dimension_numbers<[1], [1], [0], [0], [0, 0, 1, 0], [], []>} : vector<8x16xbf16>, vector<8x16xbf16>, vector<8x8xf32> -> vector<8x8xf32>
    %cst_73 = arith.constant 2.500000e-01 : f32
    %125 = vector.broadcast %cst_73 : f32 to vector<8x8xf32>
    %126 = arith.mulf %124, %125 : vector<8x8xf32>
    %c3 = arith.constant 3 : index
    %c0_74 = arith.constant 0 : index
    %c0_75 = arith.constant 0 : index
    %127 = vector.load %arg6[%c3, %c0_74, %c0_75] : memref<4x8x1xf32, #tpu.memory_space<vmem>>, vector<1x8x1xf32>
    %128 = vector.shape_cast %127 : vector<1x8x1xf32> to vector<8x1xf32>
    %c3_76 = arith.constant 3 : index
    %c0_77 = arith.constant 0 : index
    %c0_78 = arith.constant 0 : index
    %129 = vector.load %arg7[%c3_76, %c0_77, %c0_78] : memref<4x8x1xf32, #tpu.memory_space<vmem>>, vector<1x8x1xf32>
    %130 = vector.shape_cast %129 : vector<1x8x1xf32> to vector<8x1xf32>
    %cst_79 = arith.constant dense<0xFF800000> : vector<8xf32>
    %131 = vector.multi_reduction <maximumf>, %126, %cst_79 [1] : vector<8x8xf32> to vector<8xf32>
    %132 = vector.shape_cast %131 : vector<8xf32> to vector<8x1xf32>
    %133 = arith.maximumf %128, %132 : vector<8x1xf32>
    %134 = arith.subf %128, %133 : vector<8x1xf32>
    %135 = math.exp %134 : vector<8x1xf32>
    %136 = vector.broadcast %133 : vector<8x1xf32> to vector<8x8xf32>
    %137 = arith.subf %126, %136 : vector<8x8xf32>
    %138 = math.exp %137 : vector<8x8xf32>
    %139 = arith.mulf %135, %130 : vector<8x1xf32>
    %cst_80 = arith.constant dense<0.000000e+00> : vector<8xf32>
    %140 = vector.multi_reduction <add>, %138, %cst_80 [1] : vector<8x8xf32> to vector<8xf32>
    %141 = vector.shape_cast %140 : vector<8xf32> to vector<8x1xf32>
    %142 = arith.addf %139, %141 : vector<8x1xf32>
    %c3_81 = arith.constant 3 : index
    %c0_82 = arith.constant 0 : index
    %c0_83 = arith.constant 0 : index
    %143 = vector.load %arg7[%c3_81, %c0_82, %c0_83] : memref<4x8x1xf32, #tpu.memory_space<vmem>>, vector<1x8x1xf32>
    %144 = vector.shape_cast %143 : vector<1x8x1xf32> to vector<8x1xf32>
    %145 = vector.shape_cast %142 : vector<8x1xf32> to vector<1x8x1xf32>
    tpu.vector_store %arg7[%c3_81, %c0_82, %c0_83], %145 {strides = array<i32>} : memref<4x8x1xf32, #tpu.memory_space<vmem>>, vector<1x8x1xf32>,
    %c3_84 = arith.constant 3 : index
    %c0_85 = arith.constant 0 : index
    %c0_86 = arith.constant 0 : index
    %146 = vector.load %arg8[%c3_84, %c0_85, %c0_86] : memref<4x8x16xf32, #tpu.memory_space<vmem>>, vector<1x8x16xf32>
    %147 = vector.shape_cast %146 : vector<1x8x16xf32> to vector<8x16xf32>
    %148 = vector.broadcast %135 : vector<8x1xf32> to vector<8x16xf32>
    %149 = arith.mulf %148, %147 : vector<8x16xf32>
    %150 = arith.truncf %138 : vector<8x8xf32> to vector<8x8xbf16>
    %cst_87 = arith.constant dense<0.000000e+00> : vector<8x16xf32>
    %151 = tpu.matmul %150, %123, %cst_87 {dimension_numbers = #tpu.dot_dimension_numbers<[1], [0], [0], [1], [0, 0, 1, 1], [], []>} : vector<8x8xbf16>, vector<8x16xbf16>, vector<8x16xf32> -> vector<8x16xf32>
    %152 = arith.addf %149, %151 : vector<8x16xf32>
    %c3_88 = arith.constant 3 : index
    %c0_89 = arith.constant 0 : index
    %c0_90 = arith.constant 0 : index
    %153 = vector.load %arg8[%c3_88, %c0_89, %c0_90] : memref<4x8x16xf32, #tpu.memory_space<vmem>>, vector<1x8x16xf32>
    %154 = vector.shape_cast %153 : vector<1x8x16xf32> to vector<8x16xf32>
    %155 = vector.shape_cast %152 : vector<8x16xf32> to vector<1x8x16xf32>
    tpu.vector_store %arg8[%c3_88, %c0_89, %c0_90], %155 {strides = array<i32>} : memref<4x8x16xf32, #tpu.memory_space<vmem>>, vector<1x8x16xf32>,
    %c3_91 = arith.constant 3 : index
    %c0_92 = arith.constant 0 : index
    %c0_93 = arith.constant 0 : index
    %156 = vector.load %arg6[%c3_91, %c0_92, %c0_93] : memref<4x8x1xf32, #tpu.memory_space<vmem>>, vector<1x8x1xf32>
    %157 = vector.shape_cast %156 : vector<1x8x1xf32> to vector<8x1xf32>
    %158 = vector.shape_cast %133 : vector<8x1xf32> to vector<1x8x1xf32>
    tpu.vector_store %arg6[%c3_91, %c0_92, %c0_93], %158 {strides = array<i32>} : memref<4x8x1xf32, #tpu.memory_space<vmem>>, vector<1x8x1xf32>,
    %c0_i32_94 = arith.constant 0 : i32
    %159 = arith.cmpi eq, %arg2, %c0_i32_94 : i32
    %160 = arith.extui %159 : i1 to i32
    %c0_i32_95 = arith.constant 0 : i32
    %161 = arith.cmpi ne, %160, %c0_i32_95 : i32
    scf.if %161 {
      %c0_96 = arith.constant 0 : index
      %c0_97 = arith.constant 0 : index
      %c0_98 = arith.constant 0 : index
      %162 = vector.load %arg7[%c0_96, %c0_97, %c0_98] : memref<4x8x1xf32, #tpu.memory_space<vmem>>, vector<1x8x1xf32>
      %163 = vector.shape_cast %162 : vector<1x8x1xf32> to vector<8x1xf32>
      %cst_99 = arith.constant 0.000000e+00 : f32
      %164 = vector.broadcast %cst_99 : f32 to vector<8x1xf32>
      %165 = arith.cmpf oeq, %163, %164 : vector<8x1xf32>
      %cst_100 = arith.constant 1.000000e+00 : f32
      %166 = vector.broadcast %cst_100 : f32 to vector<8x1xf32>
      %167 = arith.select %165, %166, %163 : vector<8x1xi1>, vector<8x1xf32>
      %168 = tpu.reciprocal %167 {approx = true} : vector<8x1xf32> -> vector<8x1xf32>
      %c0_101 = arith.constant 0 : index
      %c0_102 = arith.constant 0 : index
      %c0_103 = arith.constant 0 : index
      %169 = vector.load %arg8[%c0_101, %c0_102, %c0_103] : memref<4x8x16xf32, #tpu.memory_space<vmem>>, vector<1x8x16xf32>
      %170 = vector.shape_cast %169 : vector<1x8x16xf32> to vector<8x16xf32>
      %171 = vector.broadcast %168 : vector<8x1xf32> to vector<8x16xf32>
      %172 = arith.mulf %170, %171 : vector<8x16xf32>
      %c1_104 = arith.constant 1 : index
      %c0_105 = arith.constant 0 : index
      %c0_106 = arith.constant 0 : index
      %173 = vector.load %arg7[%c1_104, %c0_105, %c0_106] : memref<4x8x1xf32, #tpu.memory_space<vmem>>, vector<1x8x1xf32>
      %174 = vector.shape_cast %173 : vector<1x8x1xf32> to vector<8x1xf32>
      %cst_107 = arith.constant 0.000000e+00 : f32
      %175 = vector.broadcast %cst_107 : f32 to vector<8x1xf32>
      %176 = arith.cmpf oeq, %174, %175 : vector<8x1xf32>
      %cst_108 = arith.constant 1.000000e+00 : f32
      %177 = vector.broadcast %cst_108 : f32 to vector<8x1xf32>
      %178 = arith.select %176, %177, %174 : vector<8x1xi1>, vector<8x1xf32>
      %179 = tpu.reciprocal %178 {approx = true} : vector<8x1xf32> -> vector<8x1xf32>
      %c1_109 = arith.constant 1 : index
      %c0_110 = arith.constant 0 : index
      %c0_111 = arith.constant 0 : index
      %180 = vector.load %arg8[%c1_109, %c0_110, %c0_111] : memref<4x8x16xf32, #tpu.memory_space<vmem>>, vector<1x8x16xf32>
      %181 = vector.shape_cast %180 : vector<1x8x16xf32> to vector<8x16xf32>
      %182 = vector.broadcast %179 : vector<8x1xf32> to vector<8x16xf32>
      %183 = arith.mulf %181, %182 : vector<8x16xf32>
      %c2_112 = arith.constant 2 : index
      %c0_113 = arith.constant 0 : index
      %c0_114 = arith.constant 0 : index
      %184 = vector.load %arg7[%c2_112, %c0_113, %c0_114] : memref<4x8x1xf32, #tpu.memory_space<vmem>>, vector<1x8x1xf32>
      %185 = vector.shape_cast %184 : vector<1x8x1xf32> to vector<8x1xf32>
      %cst_115 = arith.constant 0.000000e+00 : f32
      %186 = vector.broadcast %cst_115 : f32 to vector<8x1xf32>
      %187 = arith.cmpf oeq, %185, %186 : vector<8x1xf32>
      %cst_116 = arith.constant 1.000000e+00 : f32
      %188 = vector.broadcast %cst_116 : f32 to vector<8x1xf32>
      %189 = arith.select %187, %188, %185 : vector<8x1xi1>, vector<8x1xf32>
      %190 = tpu.reciprocal %189 {approx = true} : vector<8x1xf32> -> vector<8x1xf32>
      %c2_117 = arith.constant 2 : index
      %c0_118 = arith.constant 0 : index
      %c0_119 = arith.constant 0 : index
      %191 = vector.load %arg8[%c2_117, %c0_118, %c0_119] : memref<4x8x16xf32, #tpu.memory_space<vmem>>, vector<1x8x16xf32>
      %192 = vector.shape_cast %191 : vector<1x8x16xf32> to vector<8x16xf32>
      %193 = vector.broadcast %190 : vector<8x1xf32> to vector<8x16xf32>
      %194 = arith.mulf %192, %193 : vector<8x16xf32>
      %c3_120 = arith.constant 3 : index
      %c0_121 = arith.constant 0 : index
      %c0_122 = arith.constant 0 : index
      %195 = vector.load %arg7[%c3_120, %c0_121, %c0_122] : memref<4x8x1xf32, #tpu.memory_space<vmem>>, vector<1x8x1xf32>
      %196 = vector.shape_cast %195 : vector<1x8x1xf32> to vector<8x1xf32>
      %cst_123 = arith.constant 0.000000e+00 : f32
      %197 = vector.broadcast %cst_123 : f32 to vector<8x1xf32>
      %198 = arith.cmpf oeq, %196, %197 : vector<8x1xf32>
      %cst_124 = arith.constant 1.000000e+00 : f32
      %199 = vector.broadcast %cst_124 : f32 to vector<8x1xf32>
      %200 = arith.select %198, %199, %196 : vector<8x1xi1>, vector<8x1xf32>
      %201 = tpu.reciprocal %200 {approx = true} : vector<8x1xf32> -> vector<8x1xf32>
      %c3_125 = arith.constant 3 : index
      %c0_126 = arith.constant 0 : index
      %c0_127 = arith.constant 0 : index
      %202 = vector.load %arg8[%c3_125, %c0_126, %c0_127] : memref<4x8x16xf32, #tpu.memory_space<vmem>>, vector<1x8x16xf32>
      %203 = vector.shape_cast %202 : vector<1x8x16xf32> to vector<8x16xf32>
      %204 = vector.broadcast %201 : vector<8x1xf32> to vector<8x16xf32>
      %205 = arith.mulf %203, %204 : vector<8x16xf32>
      %206 = tpu.concatenate %172, %183, %194, %205 in 1 : vector<8x16xf32>, vector<8x16xf32>, vector<8x16xf32>, vector<8x16xf32> -> vector<8x64xf32>
      %c0_128 = arith.constant 0 : index
      %c0_129 = arith.constant 0 : index
      %c0_130 = arith.constant 0 : index
      %207 = vector.load %arg5[%c0_128, %c0_129, %c0_130] : memref<1x8x64xf32, #tpu.memory_space<vmem>>, vector<1x8x64xf32>
      %208 = vector.shape_cast %207 : vector<1x8x64xf32> to vector<8x64xf32>
      %209 = vector.shape_cast %206 : vector<8x64xf32> to vector<1x8x64xf32>
      tpu.vector_store %arg5[%c0_128, %c0_129, %c0_130], %209 {strides = array<i32>} : memref<1x8x64xf32, #tpu.memory_space<vmem>>, vector<1x8x64xf32>,
    } else {
    }
    return
  }
  func.func @transform_0(%arg0: i32, %arg1: i32, %arg2: i32) -> (i32, i32, i32) {
    %c0_i32 = arith.constant 0 : i32
    %c0_i32_0 = arith.constant 0 : i32
    return %arg0, %arg1, %c0_i32 : i32, i32, i32
  }
  func.func @transform_1(%arg0: i32, %arg1: i32, %arg2: i32) -> (i32, i32, i32) {
    %c0_i32 = arith.constant 0 : i32
    %c0_i32_0 = arith.constant 0 : i32
    return %arg0, %arg2, %c0_i32 : i32, i32, i32
  }
  func.func @transform_2(%arg0: i32, %arg1: i32, %arg2: i32) -> (i32, i32, i32) {
    %c0_i32 = arith.constant 0 : i32
    %c0_i32_0 = arith.constant 0 : i32
    return %arg0, %arg1, %c0_i32 : i32, i32, i32
  }
}

</mosaic_0001>

<llo_original>
// kernel: tpu_custom_call.1
$region0: #{tpu_custom_call.1}
  #allocation0 [shape = 'u32[]', space=smem, size = 0x4, offset = 0x4, fixed_abs, tag = 'smem constant byte address 0x4 - core index']
  #allocation1 [shape = 'u32[72,128]{1,0:T(1,128)}', space=vmem, size = 0x9000, scoped, tag = 'internal scratch']
  #allocation2 [shape = 'f32[4,8,1]{2,1,0:T(8,128)}', space=vmem, size = 0x4000, scoped, tag = 'scratch operand']
  #allocation3 [shape = 'f32[4,8,1]{2,1,0:T(8,128)}', space=vmem, size = 0x4000, scoped, tag = 'scratch operand']
  #allocation4 [shape = 'f32[4,8,16]{2,1,0:T(8,128)}', space=vmem, size = 0x4000, scoped, tag = 'scratch operand']
  %s0 = inlined_call_operand.hbm [shape: bf16[2,8,64], index: 0, kind: input, shape index: {}]
  %s1 = inlined_call_operand.hbm [shape: bf16[2,8,128], index: 1, kind: input, shape index: {}]
  %s2 = inlined_call_operand.hbm [shape: f32[2,8,64], index: 2, kind: output, shape index: {}]
  %s3 = sld [smem:[#allocation0]]
  $region57: #{tpu_custom_call.1} parent=0
    _
  %s5 = ssub.s32 1, %s3
  %s6 = scalar_select 0, %s5, %s3
  $region1: #{tpu_custom_call.1} parent=0
    #allocation5 [shape = 'u8[4096]{0}', space=vmem, size = 0x1000, scoped, tag = 'input window, operand 0']
    #allocation6 [shape = 's32[2]{0}', space=sflag, size = 0x8, scoped, tag = 'scoped memory for tpu_custom_call.1']
    #allocation7 [shape = 's32[2]{0}', space=sflag, size = 0x8, scoped, tag = 'scoped memory for tpu_custom_call.1']
    #allocation8 [shape = 'u8[4096]{0}', space=vmem, size = 0x1000, scoped, tag = 'input window, operand 1']
    #allocation9 [shape = 's32[2]{0}', space=sflag, size = 0x8, scoped, tag = 'scoped memory for tpu_custom_call.1']
    #allocation10 [shape = 'u8[8192]{0}', space=vmem, size = 0x2000, scoped, tag = 'output window, operand 0']
    %7 = vsyncpa [#allocation6], 0
    %s8 = scalar_lea.sflag [#allocation6], 1
    %9 = vsyncpa %s8, 0
    %10 = vsyncpa [#allocation9], 0
    %s11 = scalar_lea.sflag [#allocation9], 1
    %12 = vsyncpa %s11, 0
    %13 = vsyncpa [#allocation7], 0
    %s14 = scalar_lea.sflag [#allocation7], 1
    %15 = vsyncpa %s14, 0
    loop: start=0, step=1, limit=4
    $region2: #{tpu_custom_call.1} parent=1 // loop_pre_header
      _
    $region3: #{tpu_custom_call.1} parent=1 // loop_header
      %s17 = sphi 0, %s21
      %p18 = scmp.ge.s32.totalorder %s17, 4
      %s24 = sphi 0, %s43
      %s25 = sphi 0, %s39
      %s26 = sphi 0, %s35
      %s27 = sphi 0, %s24
      %s28 = sphi 0, %s25
      %s29 = sphi 0, %s26
      %s30 = sphi 0, %s27
      %s31 = sphi 0, %s28
      %s32 = sphi 0, %s29
      %s48 = sphi 0, %s50
      %s51 = sphi 0, %s48
      %s52 = sphi 0, %s51
      %s68 = sphi 0, %s52
      %s76 = sphi 0, %s78
      %s79 = sphi 0, %s76
      %s80 = sphi 0, %s79
      %s96 = sphi 0, %s80
      %s104 = sphi 0, %s106
      %s107 = sphi 0, %s104
      %s108 = sphi 0, %s107
      %s124 = sphi 0, %s108
    $region4: #{tpu_custom_call.1} parent=1 // loop_header_branch
      %20 = sbr.rel (%p18) target = $region8
    $region5: #{tpu_custom_call.1} parent=1 // loop_body
      %s22 = ssub.s32 %s17, 1
      %s23 = ssub.s32 %s17, 2
      %s33 = sadd.s32 1, %s26
      %p34 = scmp.ge.s32.totalorder %s33, 1
      %s35 = scalar_select %p34, 0, %s33
      %s36 = sadd.s32 1, %s25
      %s37 = scalar_select %p34, %s36, %s25
      %p38 = scmp.ge.s32.totalorder %s37, 1
      %s39 = scalar_select %p38, 0, %s37
      %s40 = sadd.s32 1, %s24
      %s41 = scalar_select %p38, %s40, %s24
      %p42 = scmp.ge.s32.totalorder %s41, 2
      %s43 = scalar_select %p42, 0, %s41
      %s44 = ssub.s32 %s24, %s43
      %s45 = ssub.s32 %s25, %s39
      %s46 = sor.u32 %s44, %s45
      %p47 = scmp.eq.s32.totalorder %s46, 0
      %s49 = sadd.s32 %s48, 1
      %s50 = scalar_select %p47, %s48, %s49
      %p53 = pneg %p47
      %p54 = scmp.eq.s32.totalorder %s17, 1
      %p55 = por %p53, %p54
      %p56 = scmp.ne.s32.totalorder %s48, %s51
      %p57 = scmp.eq.s32.totalorder %s17, 0
      %p58 = por %p56, %p57
      %p59 = scmp.ne.s32.totalorder %s48, %s51
      %p60 = scmp.eq.s32.totalorder %s22, 1
      %p61 = por %p59, %p60
      %p62 = scmp.ne.s32.totalorder %s51, %s52
      %p63 = scmp.eq.s32.totalorder %s22, 0
      %p64 = por %p62, %p63
      %p65 = scmp.ne.s32.totalorder %s51, %s52
      %p66 = scmp.eq.s32.totalorder %s23, 1
      %p67 = por %p65, %p66
      %p69 = scmp.ne.s32.totalorder %s52, %s68
      %p70 = scmp.eq.s32.totalorder %s23, 0
      %p71 = por %p69, %p70
      %s72 = ssub.s32 %s24, %s43
      %s73 = ssub.s32 %s26, %s35
      %s74 = sor.u32 %s72, %s73
      %p75 = scmp.eq.s32.totalorder %s74, 0
      %s77 = sadd.s32 %s76, 1
      %s78 = scalar_select %p75, %s76, %s77
      %p81 = pneg %p75
      %p82 = scmp.eq.s32.totalorder %s17, 1
      %p83 = por %p81, %p82
      %p84 = scmp.ne.s32.totalorder %s76, %s79
      %p85 = scmp.eq.s32.totalorder %s17, 0
      %p86 = por %p84, %p85
      %p87 = scmp.ne.s32.totalorder %s76, %s79
      %p88 = scmp.eq.s32.totalorder %s22, 1
      %p89 = por %p87, %p88
      %p90 = scmp.ne.s32.totalorder %s79, %s80
      %p91 = scmp.eq.s32.totalorder %s22, 0
      %p92 = por %p90, %p91
      %p93 = scmp.ne.s32.totalorder %s79, %s80
      %p94 = scmp.eq.s32.totalorder %s23, 1
      %p95 = por %p93, %p94
      %p97 = scmp.ne.s32.totalorder %s80, %s96
      %p98 = scmp.eq.s32.totalorder %s23, 0
      %p99 = por %p97, %p98
      %s100 = ssub.s32 %s24, %s43
      %s101 = ssub.s32 %s25, %s39
      %s102 = sor.u32 %s100, %s101
      %p103 = scmp.eq.s32.totalorder %s102, 0
      %s105 = sadd.s32 %s104, 1
      %s106 = scalar_select %p103, %s104, %s105
      %p109 = pneg %p103
      %p110 = scmp.eq.s32.totalorder %s17, 1
      %p111 = por %p109, %p110
      %p112 = scmp.ne.s32.totalorder %s104, %s107
      %p113 = scmp.eq.s32.totalorder %s17, 0
      %p114 = por %p112, %p113
      %p115 = scmp.ne.s32.totalorder %s104, %s107
      %p116 = scmp.eq.s32.totalorder %s22, 1
      %p117 = por %p115, %p116
      %p118 = scmp.ne.s32.totalorder %s107, %s108
      %p119 = scmp.eq.s32.totalorder %s22, 0
      %p120 = por %p118, %p119
      %p121 = scmp.ne.s32.totalorder %s107, %s108
      %p122 = scmp.eq.s32.totalorder %s23, 1
      %p123 = por %p121, %p122
      %p125 = scmp.ne.s32.totalorder %s108, %s124
      %p126 = scmp.eq.s32.totalorder %s23, 0
      %p127 = por %p125, %p126
      %p128 = scmp.le.s32.totalorder 1, %s17
      %p129 = scmp.lt.s32.totalorder %s17, 3
      %p130 = pnand %p128, %p129
      %p131 = pneg %p130
      // Predicated region
      $region9: #{tpu_custom_call.1} parent=5 // pred_check
        _
      $region10: #{tpu_custom_call.1} parent=5 // pred_check_branch
        %133 = sbr.rel (%p130) target = $region12
      $region11: #{tpu_custom_call.1} parent=5 // pred_region
        %s134 = ssub.s32 %s17, 1
      $region12: #{tpu_custom_call.1} parent=5 // pred_fallthru
        _
      %p135 = scmp.lt.s32.totalorder %s17, 2
      // Predicated region
      $region13: #{tpu_custom_call.1} parent=5 // pred_check
        %p136 = pneg %p135
      $region14: #{tpu_custom_call.1} parent=5 // pred_check_branch
        %138 = sbr.rel (%p136) target = $region16
      $region15: #{tpu_custom_call.1} parent=5 // pred_region
        // Predicated region
        $region17: #{tpu_custom_call.1} parent=15 // pred_check
          %p139 = pneg %p58
        $region18: #{tpu_custom_call.1} parent=15 // pred_check_branch
          %141 = sbr.rel (%p139) target = $region20
        $region19: #{tpu_custom_call.1} parent=15 // pred_region
          %s142 = sand.u32 %s48, 1
          %s143 = scalar_lea.sflag [#allocation6], %s142
          %s144 = sand.u32 %s48, 1
          %s145 = smul.addr %s144, 4
          %s146 = scalar_lea.vmem [#allocation5], %s145
          %148 = vsyncadd %s143, 0
          %s149 = sadd.s32 %s25, %s24
          %s150 = smul.addr %s149, 4
          %s151 = scalar_lea.hbm %s0, %s150
          %s153 = sshll.u32 %s151, 4
          %s154 = int_to_ptr.hbm [resolvable:$true] %s153
          %s155 = sshll.u32 %s146, 4
          %s156 = int_to_ptr.vmem [resolvable:$true] %s155
          %158 = dma.hbm_to_vmem [thread:$0]  %s154, 64, %s156, %s143
        $region20: #{tpu_custom_call.1} parent=15 // pred_fallthru
          _
        // Predicated region
        $region21: #{tpu_custom_call.1} parent=15 // pred_check
          %p159 = pneg %p86
        $region22: #{tpu_custom_call.1} parent=15 // pred_check_branch
          %161 = sbr.rel (%p159) target = $region24
        $region23: #{tpu_custom_call.1} parent=15 // pred_region
          %s162 = sand.u32 %s76, 1
          %s163 = scalar_lea.sflag [#allocation9], %s162
          %s164 = sand.u32 %s76, 1
          %s165 = smul.addr %s164, 4
          %s166 = scalar_lea.vmem [#allocation8], %s165
          %168 = vsyncadd %s163, 0
          %s169 = sadd.s32 %s26, %s24
          %s170 = smul.addr %s169, 4
          %s171 = scalar_lea.hbm %s1, %s170
          %s173 = sshll.u32 %s171, 4
          %s174 = int_to_ptr.hbm [resolvable:$true] %s173
          %s175 = sshll.u32 %s166, 4
          %s176 = int_to_ptr.vmem [resolvable:$true] %s175
          %178 = dma.hbm_to_vmem [thread:$0]  %s174, 64, %s176, %s163
        $region24: #{tpu_custom_call.1} parent=15 // pred_fallthru
          _
      $region16: #{tpu_custom_call.1} parent=5 // pred_fallthru
        _
      %p179 = scmp.le.s32.totalorder 1, %s17
      %p180 = scmp.lt.s32.totalorder %s17, 3
      %p181 = pnand %p179, %p180
      %p182 = pneg %p181
      // Predicated region
      $region25: #{tpu_custom_call.1} parent=5 // pred_check
        _
      $region26: #{tpu_custom_call.1} parent=5 // pred_check_branch
        %184 = sbr.rel (%p181) target = $region28
      $region27: #{tpu_custom_call.1} parent=5 // pred_region
        %s185 = ssub.s32 %s17, 1
        %s186 = sand.u32 %s51, 1
        %s187 = scalar_lea.sflag [#allocation6], %s186
        %s188 = sand.u32 %s51, 1
        %s189 = smul.addr %s188, 4
        %s190 = scalar_lea.vmem [#allocation5], %s189
        // Predicated region
        $region29: #{tpu_custom_call.1} parent=27 // pred_check
          %p191 = pneg %p64
        $region30: #{tpu_custom_call.1} parent=27 // pred_check_branch
          %193 = sbr.rel (%p191) target = $region32
        $region31: #{tpu_custom_call.1} parent=27 // pred_region
          %195 = dma.done %s187, 64
        $region32: #{tpu_custom_call.1} parent=27 // pred_fallthru
          _
        %s196 = sand.u32 %s79, 1
        %s197 = scalar_lea.sflag [#allocation9], %s196
        %s198 = sand.u32 %s79, 1
        %s199 = smul.addr %s198, 4
        %s200 = scalar_lea.vmem [#allocation8], %s199
        // Predicated region
        $region33: #{tpu_custom_call.1} parent=27 // pred_check
          %p201 = pneg %p92
        $region34: #{tpu_custom_call.1} parent=27 // pred_check_branch
          %203 = sbr.rel (%p201) target = $region36
        $region35: #{tpu_custom_call.1} parent=27 // pred_region
          %205 = dma.done %s197, 64
        $region36: #{tpu_custom_call.1} parent=27 // pred_fallthru
          _
        %s206 = sand.u32 %s51, 1
        %s207 = scalar_lea.sflag [#allocation6], %s206
        %s208 = sand.u32 %s51, 1
        %s209 = smul.addr %s208, 4
        %s210 = scalar_lea.vmem [#allocation5], %s209
        %p211 = pneg %p64
        %p212 = pneg %p61
        %s213 = sand.u32 %s79, 1
        %s214 = scalar_lea.sflag [#allocation9], %s213
        %s215 = sand.u32 %s79, 1
        %s216 = smul.addr %s215, 4
        %s217 = scalar_lea.vmem [#allocation8], %s216
        %p218 = pneg %p92
        %p219 = pneg %p89
        %p220 = pneg %p120
        %p221 = pneg %p117
        %s222 = sand.u32 %s107, 1
        %s223 = scalar_lea.sflag [#allocation7], %s222
        %s224 = sand.u32 %s107, 1
        %s225 = smul.addr %s224, 8
        %s226 = scalar_lea.vmem [#allocation10], %s225
        %p228 = scmp.eq.s32.totalorder %s29, 0
        // Predicated region
        $region37: #{tpu_custom_call.1} parent=27 // pred_check
          %p229 = pneg %p228
        $region38: #{tpu_custom_call.1} parent=27 // pred_check_branch
          %231 = sbr.rel (%p229) target = $region40
        $region39: #{tpu_custom_call.1} parent=27 // pred_region
          %vm232 = vcmask 7168
          %233 = vst.msk [vmem:[#allocation2] sm:$0xff] %vm232, -1e+30
          %234 = vst.msk [vmem:[#allocation2 + $0x8] sm:$0xff] %vm232, -1e+30
          %235 = vst.msk [vmem:[#allocation2 + $0x10] sm:$0xff] %vm232, -1e+30
          %236 = vst.msk [vmem:[#allocation2 + $0x18] sm:$0xff] %vm232, -1e+30
          %237 = vst.msk [vmem:[#allocation3] sm:$0xff] %vm232, 0.0
          %238 = vst.msk [vmem:[#allocation3 + $0x8] sm:$0xff] %vm232, 0.0
          %239 = vst.msk [vmem:[#allocation3 + $0x10] sm:$0xff] %vm232, 0.0
          %240 = vst.msk [vmem:[#allocation3 + $0x18] sm:$0xff] %vm232, 0.0
          %vm241 = vcmask 130048
          %242 = vst.msk [vmem:[#allocation4] sm:$0xff] %vm241, 0.0
          %243 = vst.msk [vmem:[#allocation4 + $0x8] sm:$0xff] %vm241, 0.0
          %244 = vst.msk [vmem:[#allocation4 + $0x10] sm:$0xff] %vm241, 0.0
          %245 = vst.msk [vmem:[#allocation4 + $0x18] sm:$0xff] %vm241, 0.0
        $region40: #{tpu_custom_call.1} parent=27 // pred_fallthru
          _
        %v246 = vld [vmem:[%s190] sm:$0xf]
        %v247 = vld [vmem:[%s200] sm:$0xf]
        %vm248 = vcmask 130048
        %v250 = vsel %vm248, %v246, 0
        %v253 = vsel %vm248, %v247, 0
        %255 = vmatpush.bf16.xpose.msra.mxu0 0
        %256 = vmatpush.bf16.xpose.msra.mxu0 0
        %257 = vmatpush.bf16.xpose.msra.mxu0 0
        %258 = vmatpush.bf16.xpose.msra.mxu0 0
        %259 = vmatpush.bf16.xpose.msra.mxu0 0
        %260 = vmatpush.bf16.xpose.msra.mxu0 0
        %261 = vmatpush.bf16.xpose.msra.mxu0 0
        %262 = vmatpush.bf16.xpose.msra.mxu0 %v253
        %263 = vmatmul.bf16.gmra.mxu0 %v250
        %v264 = vpop.f32.mrf.mxu0
        %v265 = vadd.f32 0.0, %v264
        %v266 = vpop.f32.mrf.mxu0
        %267 = vdwg.mxu0
        %v268 = vmul.f32 %v265, 0.25
        %v269 = vld [vmem:[#allocation2] sm:$0xff]
        %v270 = vld [vmem:[#allocation3] sm:$0xff]
        %vm271 = vcmask 64512
        %v272 = vsel %vm271, %v268, -inf
        %273 = vmax.xlane.f32.xlu0 %v272
        %v274 = vpop.xlane.xlu0 %273
        %v275 = vmax.f32 %v269, %v274
        %v276 = vsub.f32 %v269, %v275
        %v277 = vmul.f32 %v276, 1.442695
        %v278 = vpow.pop %v277
        %280 = vset.pattern.permute.xlu0 0
        %281 = vperm.xlu0 %280, %v275
        %v282 = vpop.permute.xlu0 %281
        %v284 = vsub.f32 %v268, %v282
        %v285 = vmul.f32 %v284, 1.442695
        %v286 = vpow.pop %v285
        %v287 = vmul.f32 %v278, %v270
        %v288 = vsel %vm271, %v286, 0.0
        %289 = vadd.xlane.f32.xlu0 %v288
        %v290 = vpop.xlane.xlu0 %289
        %v291 = vadd.f32 %v287, %v290
        %vm292 = vcmask 7168
        %293 = vst.msk [vmem:[#allocation3] sm:$0xff] %vm292, %v291
        %v294 = vld [vmem:[#allocation4] sm:$0xff]
        %296 = vset.pattern.permute.xlu0 0
        %297 = vperm.xlu0 %296, %v278
        %v298 = vpop.permute.xlu0 %297
        %v300 = vmul.f32 %v298, %v294
        %v301 = vpack.c.bf16 %v286, %v286
        %v303 = vunpack.c.l.b16 %v247
        %v304 = vpack.c.b16 %v303, %v303
        %305 = vrot.lane.b32.xlu0 %v304, 64
        %v306 = vpop.permute.xlu0 %305
        %v308 = vsel %vm271, %v301, 0
        %vm310 = vcmask 1043456
        %v312 = vsel %vm310, %v306, 0
        %314 = vmatpush.bf16.msra.mxu0 0
        %315 = vmatpush.bf16.msra.mxu0 0
        %316 = vmatpush.bf16.msra.mxu0 0
        %317 = vmatpush.bf16.msra.mxu0 0
        %318 = vmatpush.bf16.msra.mxu0 0
        %319 = vmatpush.bf16.msra.mxu0 0
        %320 = vmatpush.bf16.msra.mxu0 0
        %321 = vmatpush.bf16.msra.mxu0 %v312
        %322 = vmatmul.bf16.gmra.mxu0 %v308
        %v323 = vpop.f32.mrf.mxu0
        %v324 = vadd.f32 0.0, %v323
        %v325 = vpop.f32.mrf.mxu0
        %326 = vdwg.mxu0
        %v327 = vadd.f32 %v300, %v324
        %328 = vst.msk [vmem:[#allocation4] sm:$0xff] %vm248, %v327
        %329 = vst.msk [vmem:[#allocation2] sm:$0xff] %vm292, %v275
        %v331 = vunpack.c.l.b16 %v246
        %v332 = vpack.c.b16 %v331, %v331
        %333 = vrot.lane.b32.xlu0 %v332, 112
        %v334 = vpop.permute.xlu0 %333
        %335 = vrot.lane.b32.xlu0 %v304, 112
        %v336 = vpop.permute.xlu0 %335
        %v338 = vsel %vm248, %v334, 0
        %v341 = vsel %vm248, %v336, 0
        %343 = vmatpush.bf16.xpose.msra.mxu0 0
        %344 = vmatpush.bf16.xpose.msra.mxu0 0
        %345 = vmatpush.bf16.xpose.msra.mxu0 0
        %346 = vmatpush.bf16.xpose.msra.mxu0 0
        %347 = vmatpush.bf16.xpose.msra.mxu0 0
        %348 = vmatpush.bf16.xpose.msra.mxu0 0
        %349 = vmatpush.bf16.xpose.msra.mxu0 0
        %350 = vmatpush.bf16.xpose.msra.mxu0 %v341
        %351 = vmatmul.bf16.gmra.mxu0 %v338
        %v352 = vpop.f32.mrf.mxu0
        %v353 = vadd.f32 0.0, %v352
        %v354 = vpop.f32.mrf.mxu0
        %355 = vdwg.mxu0
        %v356 = vmul.f32 %v353, 0.25
        %s357 = scalar_lea.vmem [#allocation2], 8
        %v358 = vld [vmem:[%s357] sm:$0xff]
        %s359 = scalar_lea.vmem [#allocation3], 8
        %v360 = vld [vmem:[%s359] sm:$0xff]
        %v361 = vsel %vm271, %v356, -inf
        %362 = vmax.xlane.f32.xlu0 %v361
        %v363 = vpop.xlane.xlu0 %362
        %v364 = vmax.f32 %v358, %v363
        %v365 = vsub.f32 %v358, %v364
        %v366 = vmul.f32 %v365, 1.442695
        %v367 = vpow.pop %v366
        %369 = vset.pattern.permute.xlu0 0
        %370 = vperm.xlu0 %369, %v364
        %v371 = vpop.permute.xlu0 %370
        %v373 = vsub.f32 %v356, %v371
        %v374 = vmul.f32 %v373, 1.442695
        %v375 = vpow.pop %v374
        %v376 = vmul.f32 %v367, %v360
        %v377 = vsel %vm271, %v375, 0.0
        %378 = vadd.xlane.f32.xlu0 %v377
        %v379 = vpop.xlane.xlu0 %378
        %v380 = vadd.f32 %v376, %v379
        %381 = vst.msk [vmem:[%s359] sm:$0xff] %vm292, %v380
        %s382 = scalar_lea.vmem [#allocation4], 8
        %v383 = vld [vmem:[%s382] sm:$0xff]
        %385 = vset.pattern.permute.xlu0 0
        %386 = vperm.xlu0 %385, %v367
        %v387 = vpop.permute.xlu0 %386
        %v389 = vmul.f32 %v387, %v383
        %v390 = vpack.c.bf16 %v375, %v375
        %391 = vrot.lane.b32.xlu0 %v304, 48
        %v392 = vpop.permute.xlu0 %391
        %v394 = vsel %vm271, %v390, 0
        %v397 = vsel %vm310, %v392, 0
        %399 = vmatpush.bf16.msra.mxu0 0
        %400 = vmatpush.bf16.msra.mxu0 0
        %401 = vmatpush.bf16.msra.mxu0 0
        %402 = vmatpush.bf16.msra.mxu0 0
        %403 = vmatpush.bf16.msra.mxu0 0
        %404 = vmatpush.bf16.msra.mxu0 0
        %405 = vmatpush.bf16.msra.mxu0 0
        %406 = vmatpush.bf16.msra.mxu0 %v397
        %407 = vmatmul.bf16.gmra.mxu0 %v394
        %v408 = vpop.f32.mrf.mxu0
        %v409 = vadd.f32 0.0, %v408
        %v410 = vpop.f32.mrf.mxu0
        %411 = vdwg.mxu0
        %v412 = vadd.f32 %v389, %v409
        %413 = vst.msk [vmem:[%s382] sm:$0xff] %vm248, %v412
        %414 = vst.msk [vmem:[%s357] sm:$0xff] %vm292, %v364
        %415 = vrot.lane.b32.xlu0 %v332, 96
        %v416 = vpop.permute.xlu0 %415
        %417 = vrot.lane.b32.xlu0 %v304, 96
        %v418 = vpop.permute.xlu0 %417
        %v420 = vsel %vm248, %v416, 0
        %v423 = vsel %vm248, %v418, 0
        %425 = vmatpush.bf16.xpose.msra.mxu0 0
        %426 = vmatpush.bf16.xpose.msra.mxu0 0
        %427 = vmatpush.bf16.xpose.msra.mxu0 0
        %428 = vmatpush.bf16.xpose.msra.mxu0 0
        %429 = vmatpush.bf16.xpose.msra.mxu0 0
        %430 = vmatpush.bf16.xpose.msra.mxu0 0
        %431 = vmatpush.bf16.xpose.msra.mxu0 0
        %432 = vmatpush.bf16.xpose.msra.mxu0 %v423
        %433 = vmatmul.bf16.gmra.mxu0 %v420
        %v434 = vpop.f32.mrf.mxu0
        %v435 = vadd.f32 0.0, %v434
        %v436 = vpop.f32.mrf.mxu0
        %437 = vdwg.mxu0
        %v438 = vmul.f32 %v435, 0.25
        %s439 = scalar_lea.vmem [#allocation2], 16
        %v440 = vld [vmem:[%s439] sm:$0xff]
        %s441 = scalar_lea.vmem [#allocation3], 16
        %v442 = vld [vmem:[%s441] sm:$0xff]
        %v443 = vsel %vm271, %v438, -inf
        %444 = vmax.xlane.f32.xlu0 %v443
        %v445 = vpop.xlane.xlu0 %444
        %v446 = vmax.f32 %v440, %v445
        %v447 = vsub.f32 %v440, %v446
        %v448 = vmul.f32 %v447, 1.442695
        %v449 = vpow.pop %v448
        %451 = vset.pattern.permute.xlu0 0
        %452 = vperm.xlu0 %451, %v446
        %v453 = vpop.permute.xlu0 %452
        %v455 = vsub.f32 %v438, %v453
        %v456 = vmul.f32 %v455, 1.442695
        %v457 = vpow.pop %v456
        %v458 = vmul.f32 %v449, %v442
        %v459 = vsel %vm271, %v457, 0.0
        %460 = vadd.xlane.f32.xlu0 %v459
        %v461 = vpop.xlane.xlu0 %460
        %v462 = vadd.f32 %v458, %v461
        %463 = vst.msk [vmem:[%s441] sm:$0xff] %vm292, %v462
        %s464 = scalar_lea.vmem [#allocation4], 16
        %v465 = vld [vmem:[%s464] sm:$0xff]
        %467 = vset.pattern.permute.xlu0 0
        %468 = vperm.xlu0 %467, %v449
        %v469 = vpop.permute.xlu0 %468
        %v471 = vmul.f32 %v469, %v465
        %v472 = vpack.c.bf16 %v457, %v457
        %473 = vrot.lane.b32.xlu0 %v304, 32
        %v474 = vpop.permute.xlu0 %473
        %v476 = vsel %vm271, %v472, 0
        %v479 = vsel %vm310, %v474, 0
        %481 = vmatpush.bf16.msra.mxu0 0
        %482 = vmatpush.bf16.msra.mxu0 0
        %483 = vmatpush.bf16.msra.mxu0 0
        %484 = vmatpush.bf16.msra.mxu0 0
        %485 = vmatpush.bf16.msra.mxu0 0
        %486 = vmatpush.bf16.msra.mxu0 0
        %487 = vmatpush.bf16.msra.mxu0 0
        %488 = vmatpush.bf16.msra.mxu0 %v479
        %489 = vmatmul.bf16.gmra.mxu0 %v476
        %v490 = vpop.f32.mrf.mxu0
        %v491 = vadd.f32 0.0, %v490
        %v492 = vpop.f32.mrf.mxu0
        %493 = vdwg.mxu0
        %v494 = vadd.f32 %v471, %v491
        %495 = vst.msk [vmem:[%s464] sm:$0xff] %vm248, %v494
        %496 = vst.msk [vmem:[%s439] sm:$0xff] %vm292, %v446
        %497 = vrot.lane.b32.xlu0 %v332, 80
        %v498 = vpop.permute.xlu0 %497
        %499 = vrot.lane.b32.xlu0 %v304, 80
        %v500 = vpop.permute.xlu0 %499
        %v502 = vsel %vm248, %v498, 0
        %v505 = vsel %vm248, %v500, 0
        %507 = vmatpush.bf16.xpose.msra.mxu0 0
        %508 = vmatpush.bf16.xpose.msra.mxu0 0
        %509 = vmatpush.bf16.xpose.msra.mxu0 0
        %510 = vmatpush.bf16.xpose.msra.mxu0 0
        %511 = vmatpush.bf16.xpose.msra.mxu0 0
        %512 = vmatpush.bf16.xpose.msra.mxu0 0
        %513 = vmatpush.bf16.xpose.msra.mxu0 0
        %514 = vmatpush.bf16.xpose.msra.mxu0 %v505
        %515 = vmatmul.bf16.gmra.mxu0 %v502
        %v516 = vpop.f32.mrf.mxu0
        %v517 = vadd.f32 0.0, %v516
        %v518 = vpop.f32.mrf.mxu0
        %519 = vdwg.mxu0
        %v520 = vmul.f32 %v517, 0.25
        %s521 = scalar_lea.vmem [#allocation2], 24
        %v522 = vld [vmem:[%s521] sm:$0xff]
        %s523 = scalar_lea.vmem [#allocation3], 24
        %v524 = vld [vmem:[%s523] sm:$0xff]
        %v525 = vsel %vm271, %v520, -inf
        %526 = vmax.xlane.f32.xlu0 %v525
        %v527 = vpop.xlane.xlu0 %526
        %v528 = vmax.f32 %v522, %v527
        %v529 = vsub.f32 %v522, %v528
        %v530 = vmul.f32 %v529, 1.442695
        %v531 = vpow.pop %v530
        %533 = vset.pattern.permute.xlu0 0
        %534 = vperm.xlu0 %533, %v528
        %v535 = vpop.permute.xlu0 %534
        %v537 = vsub.f32 %v520, %v535
        %v538 = vmul.f32 %v537, 1.442695
        %v539 = vpow.pop %v538
        %v540 = vmul.f32 %v531, %v524
        %v541 = vsel %vm271, %v539, 0.0
        %542 = vadd.xlane.f32.xlu0 %v541
        %v543 = vpop.xlane.xlu0 %542
        %v544 = vadd.f32 %v540, %v543
        %545 = vst.msk [vmem:[%s523] sm:$0xff] %vm292, %v544
        %s546 = scalar_lea.vmem [#allocation4], 24
        %v547 = vld [vmem:[%s546] sm:$0xff]
        %549 = vset.pattern.permute.xlu0 0
        %550 = vperm.xlu0 %549, %v531
        %v551 = vpop.permute.xlu0 %550
        %v553 = vmul.f32 %v551, %v547
        %v554 = vpack.c.bf16 %v539, %v539
        %555 = vrot.lane.b32.xlu0 %v304, 16
        %v556 = vpop.permute.xlu0 %555
        %v558 = vsel %vm271, %v554, 0
        %v561 = vsel %vm310, %v556, 0
        %563 = vmatpush.bf16.msra.mxu0 0
        %564 = vmatpush.bf16.msra.mxu0 0
        %565 = vmatpush.bf16.msra.mxu0 0
        %566 = vmatpush.bf16.msra.mxu0 0
        %567 = vmatpush.bf16.msra.mxu0 0
        %568 = vmatpush.bf16.msra.mxu0 0
        %569 = vmatpush.bf16.msra.mxu0 0
        %570 = vmatpush.bf16.msra.mxu0 %v561
        %571 = vmatmul.bf16.gmra.mxu0 %v558
        %v572 = vpop.f32.mrf.mxu0
        %v573 = vadd.f32 0.0, %v572
        %v574 = vpop.f32.mrf.mxu0
        %575 = vdwg.mxu0
        %v576 = vadd.f32 %v553, %v573
        %577 = vst.msk [vmem:[%s546] sm:$0xff] %vm248, %v576
        %578 = vst.msk [vmem:[%s521] sm:$0xff] %vm292, %v528
        // Predicated region
        $region41: #{tpu_custom_call.1} parent=27 // pred_check
          %p579 = pneg %p228
        $region42: #{tpu_custom_call.1} parent=27 // pred_check_branch
          %581 = sbr.rel (%p579) target = $region44
        $region43: #{tpu_custom_call.1} parent=27 // pred_region
          %v582 = vld [vmem:[#allocation3] sm:$0xff]
          %vm583 = vcmp.eq.f32.partialorder %v582, 0.0
          %v584 = vsel %vm583, 1.0, %v582
          %v585 = vrcp.pop %v584
          %v586 = vld [vmem:[#allocation4] sm:$0xff]
          %588 = vset.pattern.permute.xlu0 0
          %589 = vperm.xlu0 %588, %v585
          %v590 = vpop.permute.xlu0 %589
          %v592 = vmul.f32 %v586, %v590
          %v593 = vld [vmem:[%s359] sm:$0xff]
          %vm594 = vcmp.eq.f32.partialorder %v593, 0.0
          %v595 = vsel %vm594, 1.0, %v593
          %v596 = vrcp.pop %v595
          %v597 = vld [vmem:[%s382] sm:$0xff]
          %599 = vset.pattern.permute.xlu0 0
          %600 = vperm.xlu0 %599, %v596
          %v601 = vpop.permute.xlu0 %600
          %v603 = vmul.f32 %v597, %v601
          %v604 = vld [vmem:[%s441] sm:$0xff]
          %vm605 = vcmp.eq.f32.partialorder %v604, 0.0
          %v606 = vsel %vm605, 1.0, %v604
          %v607 = vrcp.pop %v606
          %v608 = vld [vmem:[%s464] sm:$0xff]
          %610 = vset.pattern.permute.xlu0 0
          %611 = vperm.xlu0 %610, %v607
          %v612 = vpop.permute.xlu0 %611
          %v614 = vmul.f32 %v608, %v612
          %v615 = vld [vmem:[%s523] sm:$0xff]
          %vm616 = vcmp.eq.f32.partialorder %v615, 0.0
          %v617 = vsel %vm616, 1.0, %v615
          %v618 = vrcp.pop %v617
          %v619 = vld [vmem:[%s546] sm:$0xff]
          %621 = vset.pattern.permute.xlu0 0
          %622 = vperm.xlu0 %621, %v618
          %v623 = vpop.permute.xlu0 %622
          %v625 = vmul.f32 %v619, %v623
          %627 = vrot.lane.b32.xlu0 %v603, 16
          %v628 = vpop.permute.xlu0 %627
          %631 = vrot.lane.b32.xlu0 %v614, 32
          %v632 = vpop.permute.xlu0 %631
          %635 = vrot.lane.b32.xlu0 %v625, 48
          %v636 = vpop.permute.xlu0 %635
          %v638 = vsel %vm248, %v592, %v628
          %vm639 = vcmask 261120
          %v640 = vsel %vm639, %v638, %v632
          %vm641 = vcmask 392192
          %v642 = vsel %vm641, %v640, %v636
          %vm643 = vcmask 523264
          %644 = vst.msk [vmem:[%s226] sm:$0xff] %vm643, %v642
        $region44: #{tpu_custom_call.1} parent=27 // pred_fallthru
          _
        %s645 = sand.u32 %s107, 1
        %s646 = scalar_lea.sflag [#allocation7], %s645
        %s647 = sand.u32 %s107, 1
        %s648 = smul.addr %s647, 8
        %s649 = scalar_lea.vmem [#allocation10], %s648
        // Predicated region
        $region45: #{tpu_custom_call.1} parent=27 // pred_check
          %p650 = pneg %p117
        $region46: #{tpu_custom_call.1} parent=27 // pred_check_branch
          %652 = sbr.rel (%p650) target = $region48
        $region47: #{tpu_custom_call.1} parent=27 // pred_region
          %654 = vsyncadd %s646, 0
          %s655 = sadd.s32 %s28, %s27
          %s656 = smul.addr %s655, 8
          %s657 = scalar_lea.hbm %s2, %s656
          %s659 = sshll.u32 %s649, 4
          %s660 = int_to_ptr.vmem [resolvable:$true] %s659
          %s661 = sshll.u32 %s657, 4
          %s662 = int_to_ptr.hbm [resolvable:$true] %s661
          %664 = dma.vmem_to_hbm [thread:$0]  %s660, 128, %s662, %s646
        $region48: #{tpu_custom_call.1} parent=27 // pred_fallthru
          _
      $region28: #{tpu_custom_call.1} parent=5 // pred_fallthru
        _
      %p665 = scmp.le.s32.totalorder 2, %s17
      // Predicated region
      $region49: #{tpu_custom_call.1} parent=5 // pred_check
        %p666 = pneg %p665
      $region50: #{tpu_custom_call.1} parent=5 // pred_check_branch
        %668 = sbr.rel (%p666) target = $region52
      $region51: #{tpu_custom_call.1} parent=5 // pred_region
        %s669 = ssub.s32 %s17, 2
        // Predicated region
        $region53: #{tpu_custom_call.1} parent=51 // pred_check
          %p670 = pneg %p123
        $region54: #{tpu_custom_call.1} parent=51 // pred_check_branch
          %672 = sbr.rel (%p670) target = $region56
        $region55: #{tpu_custom_call.1} parent=51 // pred_region
          %s673 = sand.u32 %s108, 1
          %s674 = scalar_lea.sflag [#allocation7], %s673
          %s675 = sand.u32 %s108, 1
          %s676 = smul.addr %s675, 8
          %s677 = scalar_lea.vmem [#allocation10], %s676
          %679 = dma.done %s674, 128
        $region56: #{tpu_custom_call.1} parent=51 // pred_fallthru
          _
      $region52: #{tpu_custom_call.1} parent=5 // pred_fallthru
        _
    $region6: #{tpu_custom_call.1} parent=1 // loop_footer
      %s21 = sadd.s32 1, %s17
    $region7: #{tpu_custom_call.1} parent=1 // loop_footer_branch
      %16 = sbr.rel target = $region3
    $region8: #{tpu_custom_call.1} parent=1 // loop_exit
      _
    %680 = vsyncpa [#allocation6], 1
    %s681 = scalar_lea.sflag [#allocation6], 1
    %682 = vsyncpa %s681, 1
    %683 = vsyncpa [#allocation9], 1
    %s684 = scalar_lea.sflag [#allocation9], 1
    %685 = vsyncpa %s684, 1
    %686 = vsyncpa [#allocation7], 1
    %s687 = scalar_lea.sflag [#allocation7], 1
    %688 = vsyncpa %s687, 1

</llo_original>
